<compile_context>
chip_gen: v7x
topology: tpu7x:2x2x1
jax: 0.10.0
libtpu: 0.0.40
codegen_flags: <defaults>
</compile_context>

<pallas_src>
import jax
import jax.numpy as jnp
from jax.experimental import pallas as pl
from jax.experimental.pallas import tpu as pltpu

LANE = 128                   # vreg lane width
SUBLANE = 8                  # f32 sublane granularity
DEFAULT_BLOCK_ROWS = 4096    # 4096 x 128 f32 = 2 MiB per buffer


def _round_up(v, m):
    return ((v + m - 1) // m) * m


def linreg_relu_kernel(params_ref, x_ref, o_ref):
    # params_ref: (2,) f32 scalar-prefetch ref in SMEM -> [weight, bias]
    # x_ref, o_ref: (block_rows, 128) VMEM tiles of the lane-dense slab
    w = params_ref[0]
    b = params_ref[1]
    y = x_ref[...] * w + b                       # VPU fused mul/add, scalar broadcast
    o_ref[...] = jnp.maximum(y, 0.0).astype(o_ref.dtype)


def _run_slab(params, slab, block_rows):
    """Apply relu(w*x + b) elementwise over a (rows, 128) slab."""
    rows, lane = slab.shape
    assert lane == LANE
    num_blocks = pl.cdiv(rows, block_rows)
    return pl.pallas_call(
        linreg_relu_kernel,
        out_shape=jax.ShapeDtypeStruct((rows, LANE), slab.dtype),
        grid_spec=pltpu.PrefetchScalarGridSpec(
            num_scalar_prefetch=1,          # params -> SMEM once, before the grid
            grid=(num_blocks,),
            in_specs=[pl.BlockSpec((block_rows, LANE), lambda i, params: (i, 0))],
            out_specs=pl.BlockSpec((block_rows, LANE), lambda i, params: (i, 0)),
        ),
        compiler_params=pltpu.CompilerParams(
            dimension_semantics=("parallel",),
        ),
    )(params, slab)


def linear_regression_forward(x, weight, bias, *, max_block_rows=DEFAULT_BLOCK_ROWS):
    """x: (N, 1), weight: (1, 1), bias: (1,). Returns relu(x @ W^T + b), shape (N, 1)."""
    n, in_f = x.shape
    out_f, in_f2 = weight.shape
    assert in_f == 1 and in_f2 == 1 and out_f == 1, "module is Linear(1, 1)"
    dtype = x.dtype

    # Fold the 1x1 weight and the bias into two f32 scalars (scalar prefetch).
    params = jnp.concatenate([weight.reshape(1), bias.reshape(1)]).astype(jnp.float32)

    # Clamp tile height to a multiple of 8 sublanes (and at least 8).
    mbr = max(SUBLANE, (max_block_rows // SUBLANE) * SUBLANE)

    if n % LANE == 0:
        # Zero-copy fast path: (N, 1) -> (rows, 128) is a free row-major reshape,
        # and so is the way back; only HBM traffic is the kernel's read+write.
        rows = n // LANE
        block_rows = min(mbr, _round_up(rows, SUBLANE))
        out_slab = _run_slab(params, x.reshape(rows, LANE), block_rows)
        return out_slab.reshape(n, out_f)

    # General path (N not a multiple of 128): pad the flat input up to whole
    # (8, 128)-aligned rows, run the kernel, slice the valid prefix back out.
    # Padded elements compute relu(b) garbage and are dropped by the slice.
    rows = _round_up(pl.cdiv(n, LANE), SUBLANE)
    n_padded = rows * LANE
    block_rows = min(mbr, rows)
    x_slab = (
        jnp.zeros((n_padded,), dtype=dtype)
        .at[:n]
        .set(x.reshape(-1))
        .reshape(rows, LANE)
    )
    out_slab = _run_slab(params, x_slab, block_rows)
    return out_slab.reshape(-1)[:n].reshape(n, out_f)


if __name__ == "__main__":
    key = jax.random.PRNGKey(0)
    k_w, k_b, k_x1, k_x2, k_x3 = jax.random.split(key, 5)

    # Module shapes: Linear(in_features=1, out_features=1)
    in_features, out_features = 1, 1
    bound = 1.0 / (in_features ** 0.5)
    weight = jax.random.uniform(
        k_w, (out_features, in_features), jnp.float32, -bound, bound
    )
    bias = jax.random.uniform(k_b, (out_features,), jnp.float32, -bound, bound)

    def reference(x):
        return jnp.maximum(x @ weight.T + bias, 0.0)

    # 1) Lane-aligned batch: zero-copy fast path, single grid block.
    x1 = jax.random.normal(k_x1, (1024, in_features), jnp.float32)
    out1 = jax.block_until_ready(linear_regression_forward(x1, weight, bias))
    assert out1.shape == (1024, out_features)
    assert jnp.allclose(out1, reference(x1), atol=1e-6), "mismatch (N=1024)"

    # 2) Misaligned batch + tiny tiles: exercises pad path and a multi-block grid.
    x2 = jax.random.normal(k_x2, (3000, in_features), jnp.float32)
    out2 = jax.block_until_ready(
        linear_regression_forward(x2, weight, bias, max_block_rows=8)
    )
    assert out2.shape == (3000, out_features)
    assert jnp.allclose(out2, reference(x2), atol=1e-6), "mismatch (N=3000)"

    # 3) Tiny batch (like the original toy regression): single padded (8,128) tile.
    x3 = jax.random.normal(k_x3, (8, in_features), jnp.float32)
    out3 = jax.block_until_ready(linear_regression_forward(x3, weight, bias))
    assert out3.shape == (8, out_features)
    assert jnp.allclose(out3, reference(x3), atol=1e-6), "mismatch (N=8)"

    print("KERNEL_OK")
</pallas_src>

<mosaic_0001>
module attributes {stable_mosaic.version = 11 : i64} {
  func.func @linreg_relu_kernel(%arg0: i32, %arg1: memref<2xf32, #tpu.memory_space<smem>>, %arg2: memref<8x128xf32, #tpu.memory_space<vmem>>, %arg3: memref<8x128xf32, #tpu.memory_space<vmem>>) attributes {dimension_semantics = [#tpu.dimension_semantics<parallel>], iteration_bounds = array<i64: 1>, scalar_prefetch = 1 : i64, scratch_operands = 0 : i64, tpu.core_type = #tpu.core_type<tc>, window_params = [{transform_indices = @transform_0, window_bounds = array<i64: 8, 128>}, {transform_indices = @transform_1, window_bounds = array<i64: 8, 128>}]} {
    %c0 = arith.constant 0 : index
    %0 = memref.load %arg1[%c0] : memref<2xf32, #tpu.memory_space<smem>>
    %c1 = arith.constant 1 : index
    %1 = memref.load %arg1[%c1] : memref<2xf32, #tpu.memory_space<smem>>
    %c0_0 = arith.constant 0 : index
    %c0_1 = arith.constant 0 : index
    %2 = vector.load %arg2[%c0_0, %c0_1] : memref<8x128xf32, #tpu.memory_space<vmem>>, vector<8x128xf32>
    %3 = vector.broadcast %0 : f32 to vector<8x128xf32>
    %4 = arith.mulf %2, %3 : vector<8x128xf32>
    %5 = vector.broadcast %1 : f32 to vector<8x128xf32>
    %6 = arith.addf %4, %5 : vector<8x128xf32>
    %cst = arith.constant 0.000000e+00 : f32
    %7 = vector.broadcast %cst : f32 to vector<8x128xf32>
    %8 = arith.maximumf %6, %7 : vector<8x128xf32>
    %c0_2 = arith.constant 0 : index
    %c0_3 = arith.constant 0 : index
    %9 = vector.load %arg3[%c0_2, %c0_3] : memref<8x128xf32, #tpu.memory_space<vmem>>, vector<8x128xf32>
    tpu.vector_store %arg3[%c0_2, %c0_3], %8 {strides = array<i32>} : memref<8x128xf32, #tpu.memory_space<vmem>>, vector<8x128xf32>,
    return
  }
  func.func @transform_0(%arg0: i32, %arg1: memref<2xf32, #tpu.memory_space<smem>>) -> (i32, i32) {
    %c0_i32 = arith.constant 0 : i32
    %c0_i32_0 = arith.constant 0 : i32
    return %arg0, %c0_i32 : i32, i32
  }
  func.func @transform_1(%arg0: i32, %arg1: memref<2xf32, #tpu.memory_space<smem>>) -> (i32, i32) {
    %c0_i32 = arith.constant 0 : i32
    %c0_i32_0 = arith.constant 0 : i32
    return %arg0, %c0_i32 : i32, i32
  }
}

</mosaic_0001>

<llo_original>
// kernel: tpu_custom_call.1
$region0: #{tpu_custom_call.1}
  #allocation0 [shape = 'u32[]', space=smem, size = 0x4, offset = 0x4, fixed_abs, tag = 'smem constant byte address 0x4 - core index']
  #allocation1 [shape = 'u32[144,128]{1,0:T(1,128)}', space=vmem, size = 0x12000, scoped, tag = 'internal scratch']
  #allocation2 [shape = 's32[1]{0}', space=sflag, size = 0x4, scoped, tag = 'scoped memory for tpu_custom_call.1']
  #allocation3 [shape = 'u8[512]{0}', space=smem, size = 0x200, scoped, tag = 'prefetched SMEM operand 0']
  %s0 = inlined_call_operand.hbm [shape: f32[2], index: 0, kind: input, shape index: {}]
  %s1 = inlined_call_operand.hbm [shape: f32[8,128], index: 1, kind: input, shape index: {}]
  %s2 = inlined_call_operand.hbm [shape: f32[8,128], index: 2, kind: output, shape index: {}]
  %s3 = sld [smem:[#allocation0]]
  $region18: #{tpu_custom_call.1} parent=0
    _
  %s5 = ssub.s32 1, %s3
  %s6 = scalar_select 0, %s5, %s3
  %8 = dma.hbm_to_smem %s0, 16, [#allocation3], [#allocation2]
  %9 = dma.done [#allocation2], 16
  %10 = sfence
  $region1: #{tpu_custom_call.1} parent=0
    #allocation4 [shape = 'u8[4096]{0}', space=vmem, size = 0x1000, scoped, tag = 'input window, operand 1, single buffered']
    #allocation5 [shape = 's32[1]{0}', space=sflag, size = 0x4, scoped, tag = 'scoped memory for tpu_custom_call.1']
    #allocation6 [shape = 's32[1]{0}', space=sflag, size = 0x4, scoped, tag = 'scoped memory for tpu_custom_call.1']
    #allocation7 [shape = 'u8[4096]{0}', space=vmem, size = 0x1000, scoped, tag = 'output window, operand 0, single buffered']
    %11 = vsyncpa [#allocation5], 0
    %12 = vsyncpa [#allocation6], 0
    // Predicated region
    $region2: #{tpu_custom_call.1} parent=1 // pred_check
      _
    $region3: #{tpu_custom_call.1} parent=1 // pred_check_branch
      %14 = sbr.rel (0) target = $region5
    $region4: #{tpu_custom_call.1} parent=1 // pred_region
      %s16 = ssub.s32 128, 128
      %17 = vsyncadd [#allocation5], %s16
      %s19 = sshll.u32 [#allocation4], 4
      %s20 = int_to_ptr.vmem [resolvable:$true] %s19
      %22 = dma.hbm_to_vmem [thread:$0]  %s1, 128, %s20, [#allocation5]
    $region5: #{tpu_custom_call.1} parent=1 // pred_fallthru
      _
    // Predicated region
    $region6: #{tpu_custom_call.1} parent=1 // pred_check
      _
    $region7: #{tpu_custom_call.1} parent=1 // pred_check_branch
      %24 = sbr.rel (0) target = $region9
    $region8: #{tpu_custom_call.1} parent=1 // pred_region
      %25 = dma.done [#allocation5], 128
    $region9: #{tpu_custom_call.1} parent=1 // pred_fallthru
      _
    %s26 = sld [smem:[#allocation3]]
    %s27 = sld [smem:[#allocation3 + $0x1]]
    %v28 = vld [vmem:[#allocation4] sm:$0xff]
    %v29 = vstv %s26
    %v30 = vmul.f32 %v28, %v29
    %v31 = vstv %s27
    %v32 = vadd.f32 %v30, %v31
    %v33 = vmax.f32 %v32, 0.0
    %34 = vst [vmem:[#allocation7] sm:$0xff] %v33
    // Predicated region
    $region10: #{tpu_custom_call.1} parent=1 // pred_check
      _
    $region11: #{tpu_custom_call.1} parent=1 // pred_check_branch
      %36 = sbr.rel (0) target = $region13
    $region12: #{tpu_custom_call.1} parent=1 // pred_region
      %s38 = ssub.s32 128, 128
      %39 = vsyncadd [#allocation6], %s38
      %s41 = sshll.u32 [#allocation7], 4
      %s42 = int_to_ptr.vmem [resolvable:$true] %s41
      %44 = dma.vmem_to_hbm [thread:$0]  %s42, 128, %s2, [#allocation6]
    $region13: #{tpu_custom_call.1} parent=1 // pred_fallthru
      _
    // Predicated region
    $region14: #{tpu_custom_call.1} parent=1 // pred_check
      _
    $region15: #{tpu_custom_call.1} parent=1 // pred_check_branch
      %46 = sbr.rel (0) target = $region17
    $region16: #{tpu_custom_call.1} parent=1 // pred_region
      %47 = dma.done [#allocation6], 128
    $region17: #{tpu_custom_call.1} parent=1 // pred_fallthru
      _
    %48 = vsyncpa [#allocation5], 1
    %49 = vsyncpa [#allocation6], 1

</llo_original>
